<compile_context>
chip_gen: v7x
topology: tpu7x:2x2x1
jax: 0.10.0
libtpu: 0.0.40
codegen_flags: <defaults>
</compile_context>

<pallas_src>
import functools

import jax
import jax.numpy as jnp
from jax import lax
from jax.experimental import pallas as pl
from jax.experimental.pallas import tpu as pltpu


def _vq_kernel(z_ref, emb_ref, embt_ref, esq_ref,
               zq_ref, idx_ref, counts_ref, *, hw):
    """One grid step = one (e_dim, TM) slab of pixels from one image.

    Pixels sit on lanes, channels / codes on sublanes, so every store is
    lane-dense even for tiny e_dim.  Emits quantized channels, lane-dense
    argmin indices and a lane-dense per-tile codebook-count row (partials
    summed in the wrapper).
    """
    j = pl.program_id(1)

    z = z_ref[0]                       # (e_dim, TM)  f32, pixels on lanes
    emb = emb_ref[...]                 # (n_e, e_dim) f32 codebook
    emb_t = embt_ref[...]              # (e_dim, n_e) f32 codebook, transposed
    e_sq = esq_ref[...]                # (n_e, 1)     f32 precomputed ||e_k||^2

    e_dim, tm = z.shape
    n_e = emb.shape[0]

    # Distances up to the per-pixel constant ||z_t||^2 (irrelevant for argmin):
    #   d[k, t] = ||e_k||^2 - 2 <e_k, z_t>
    cross = jnp.dot(emb, z, preferred_element_type=jnp.float32)        # (n_e, TM)
    d = e_sq - 2.0 * cross

    # argmin over the codebook (sublane) axis, first-occurrence tie-break
    # like torch.argmin.
    code_ids = lax.broadcasted_iota(jnp.int32, (n_e, tm), 0)
    d_min = jnp.min(d, axis=0, keepdims=True)                          # (1, TM)
    min_idx = jnp.min(jnp.where(d == d_min, code_ids, n_e),
                      axis=0, keepdims=True)                           # (1, TM)
    idx_ref[...] = min_idx.reshape(1, 1, tm)                           # lane-dense

    # One-hot (codes on sublanes) and quantized channels: emb^T @ one_hot ==
    # torch.matmul(min_encodings, embedding.weight), transposed to (e_dim, TM).
    one_hot = (code_ids == min_idx).astype(jnp.float32)                # (n_e, TM)
    zq = jnp.dot(emb_t, one_hot, preferred_element_type=jnp.float32)   # (e_dim, TM)
    zq_ref[...] = zq.reshape(1, e_dim, tm)

    # Lane-validity mask (only relevant for a partial trailing pixel tile) and
    # a lane-dense counts row via one tiny MXU contraction over the lane axis
    # (exact for integer counts; avoids a sublane->lane relayout and tiny
    # masked stores).
    lane = lax.broadcasted_iota(jnp.int32, (1, tm), 1)
    valid = ((j * tm + lane) < hw).astype(jnp.float32)                 # (1, TM)
    counts = lax.dot_general(valid, one_hot, (((1,), (1,)), ((), ())),
                             preferred_element_type=jnp.float32)       # (1, n_e)
    counts_ref[...] = counts.reshape(1, 1, 1, n_e)


def vq_ema_forward(z, embedding, beta):
    """Forward pass of VectorQuantizerEMA.

    z: (bt, ch, h, w) float32 NCHW (PyTorch convention), ch == e_dim
    embedding: (n_e, e_dim) float32 codebook
    Returns (loss, z_q, perplexity, min_encodings, min_encoding_indices).
    """
    bt, ch, h, w = z.shape
    n_e, e_dim = embedding.shape
    assert ch == e_dim, "channel dim must equal e_dim"
    hw = h * w

    z32 = z.astype(jnp.float32)
    emb = embedding.astype(jnp.float32)

    # NCHW-native: (bt, ch, h, w) -> (bt, ch, h*w) is a free view.  No HBM
    # transposes on either side of the kernel.
    z3 = z32.reshape(bt, ch, hw)
    emb_t = emb.T                                        # (e_dim, n_e), tiny
    e_sq = jnp.sum(emb * emb, axis=1, keepdims=True)     # (n_e, 1), tiny

    # Pixel-tile width (lanes per grid step).  Budget the full per-step
    # working set, including the (n_e, TM) distance / one-hot intermediates,
    # so large codebooks shrink the tile instead of spilling.
    # TODO(synk): for n_e >= ~2K also chunk the distance/argmin over the
    # codebook axis (two-pass running-min) to bound the (n_e, TM) intermediate.
    bytes_per_lane = 4 * (2 * e_dim + 4 * n_e + 3)
    max_tile_hw = max(128, ((8 << 20) // bytes_per_lane) // 128 * 128)

    if hw <= max_tile_hw:
        tile_hw, n_jt = hw, 1
    else:
        tile_hw = max_tile_hw                 # multiple of 128
        n_jt = pl.cdiv(hw, tile_hw)           # partial last tile: clipped writes + mask
    if bt * n_jt < 2 and hw % 256 == 0:
        # Keep both v7x TensorCores busy when there is only a single image.
        tile_hw, n_jt = hw // 2, 2

    grid = (bt, n_jt)

    # VMEM ceiling derived from the actual chip, with the per-step working
    # set (double-buffered) plus resident constants and headroom.
    step_bytes = bytes_per_lane * tile_hw
    const_bytes = 4 * n_e * (2 * e_dim + 1)   # emb + emb_t + e_sq
    try:
        phys_vmem = pltpu.get_tpu_info().vmem_capacity_bytes
    except Exception:                          # pragma: no cover - conservative fallback
        phys_vmem = 64 << 20                   # v7x per-TC floor
    vmem_limit = int(min(int(phys_vmem * 0.9),
                         max(32 << 20, 2 * step_bytes + 2 * const_bytes + (4 << 20))))

    out_shape = (
        jax.ShapeDtypeStruct((bt, ch, hw), jnp.float32),        # z_q, NCHW-native
        jax.ShapeDtypeStruct((bt, 1, hw), jnp.int32),           # indices, lane-dense
        jax.ShapeDtypeStruct((bt, n_jt, 1, n_e), jnp.float32),  # per-tile counts
    )
    in_specs = [
        pl.BlockSpec((1, e_dim, tile_hw), lambda b, j: (b, 0, j)),   # z slab
        pl.BlockSpec((n_e, e_dim), lambda b, j: (0, 0)),             # codebook
        pl.BlockSpec((e_dim, n_e), lambda b, j: (0, 0)),             # codebook^T
        pl.BlockSpec((n_e, 1), lambda b, j: (0, 0)),                 # ||e||^2 column
        # TODO(synk): for n_e >= ~4K give the three constant inputs
        # pipeline_mode=pl.Buffered(1) to drop their dead second buffer.
    ]
    out_specs = (
        pl.BlockSpec((1, e_dim, tile_hw), lambda b, j: (b, 0, j)),
        pl.BlockSpec((1, 1, tile_hw), lambda b, j: (b, 0, j)),
        pl.BlockSpec((1, 1, 1, n_e), lambda b, j: (b, j, 0, 0)),
    )

    zq3, idx3, count_tiles = pl.pallas_call(
        functools.partial(_vq_kernel, hw=hw),
        out_shape=out_shape,
        grid_spec=pltpu.PrefetchScalarGridSpec(
            num_scalar_prefetch=0,
            grid=grid,
            in_specs=in_specs,
            out_specs=out_specs,
        ),
        compiler_params=pltpu.CompilerParams(
            dimension_semantics=("parallel", "parallel"),   # per-tile partials
            vmem_limit_bytes=vmem_limit),
    )(z3, emb, emb_t, e_sq)

    # ---- plain-JAX glue (free views + scalar finalization) ----
    n = bt * hw
    z_q = zq3.reshape(bt, ch, h, w)                       # free view back to NCHW
    counts = jnp.sum(count_tiles, axis=(0, 1, 2))         # (n_e,)

    # Loss and straight-through estimator computed outside the kernel so that
    # jax.grad w.r.t. z works (pallas_call has no VJP); matches torch:
    #   commitment_loss = mse(z_q.detach(), z) * beta ; z_q = z + (z_q - z).detach()
    loss = beta * jnp.mean((lax.stop_gradient(z_q) - z32) ** 2)
    z_q_st = z32 + lax.stop_gradient(z_q - z32)

    avg_probs = counts / jnp.float32(n)
    perplexity = jnp.exp(-jnp.sum(avg_probs * jnp.log(avg_probs + 1e-10)))

    idx_flat = idx3.reshape(-1)
    # min_encodings kept only for API parity with the torch module; training
    # paths should drop it (it is the one remaining O(N x n_e) array).
    # TODO(synk): for the EMA update path, emit per-tile one_hot @ z^T ('dw')
    # partials from the kernel instead of materializing min_encodings.
    min_encodings = jax.nn.one_hot(idx_flat, n_e, dtype=jnp.float32)
    # TODO(synk): torch returns int64 indices; int32 used here (x64 disabled).
    min_encoding_indices = idx3.reshape(bt, h, w)
    return loss, z_q_st, perplexity, min_encodings, min_encoding_indices


def _reference(z, embedding, beta):
    """Pure-JAX reference matching the PyTorch forward (for sanity check)."""
    bt, ch, h, w = z.shape
    zf = jnp.transpose(z, (0, 2, 3, 1)).reshape(-1, ch)
    d = (jnp.sum(zf ** 2, axis=1, keepdims=True)
         + jnp.sum(embedding ** 2, axis=1)
         - 2.0 * zf @ embedding.T)
    idx = jnp.argmin(d, axis=1)
    enc = jax.nn.one_hot(idx, embedding.shape[0], dtype=jnp.float32)
    zq = jnp.transpose((enc @ embedding).reshape(bt, h, w, ch), (0, 3, 1, 2))
    loss = beta * jnp.mean((zq - z) ** 2)
    avg = jnp.mean(enc, axis=0)
    perp = jnp.exp(-jnp.sum(avg * jnp.log(avg + 1e-10)))
    return loss, zq, perp, enc, idx.reshape(bt, h, w)


def _check(z, embedding, beta):
    loss, z_q, perp, enc, idx = vq_ema_forward(z, embedding, beta)
    jax.block_until_ready((loss, z_q, perp, enc, idx))
    r_loss, r_zq, r_perp, r_enc, r_idx = _reference(z, embedding, beta)
    assert jnp.allclose(loss, r_loss, atol=1e-5), (loss, r_loss)
    assert jnp.allclose(z_q, r_zq, atol=1e-5)
    assert jnp.allclose(perp, r_perp, atol=1e-4)
    assert jnp.allclose(enc, r_enc)
    assert jnp.array_equal(idx, r_idx.astype(idx.dtype))


if __name__ == "__main__":
    # Module hyperparameters (synthetic, deterministic init — no checkpoint).
    n_e, e_dim = 16, 4
    beta, decay, epsilon = 0.25, 0.99, 1e-5  # decay/epsilon unused in forward

    key = jax.random.PRNGKey(0)
    k_z, k_emb, k_z2 = jax.random.split(key, 3)
    # nn.Embedding weight init: uniform(-1/n_e, 1/n_e)
    embedding = jax.random.uniform(
        k_emb, (n_e, e_dim), minval=-1.0 / n_e, maxval=1.0 / n_e,
        dtype=jnp.float32)

    # Primary check: (2, 4, 16, 16) -> hw = 256, one lane-dense tile per image.
    z = jax.random.normal(k_z, (2, e_dim, 16, 16), dtype=jnp.float32)
    _check(z, embedding, beta)

    # Secondary check: (2, 4, 20, 20) -> hw = 400 (not a multiple of 128); the
    # full-image tile equals the array dim so no padding / relayout is needed.
    z2 = jax.random.normal(k_z2, (2, e_dim, 20, 20), dtype=jnp.float32)
    _check(z2, embedding, beta)

    print("KERNEL_OK")
</pallas_src>

<mosaic_0001>
module attributes {stable_mosaic.version = 11 : i64} {
  func.func @_vq_kernel(%arg0: i32, %arg1: i32, %arg2: memref<1x4x256xf32, #tpu.memory_space<vmem>>, %arg3: memref<16x4xf32, #tpu.memory_space<vmem>>, %arg4: memref<4x16xf32, #tpu.memory_space<vmem>>, %arg5: memref<16x1xf32, #tpu.memory_space<vmem>>, %arg6: memref<1x4x256xf32, #tpu.memory_space<vmem>>, %arg7: memref<1x1x256xi32, #tpu.memory_space<vmem>>, %arg8: memref<1x1x1x16xf32, #tpu.memory_space<vmem>>) attributes {dimension_semantics = [#tpu.dimension_semantics<parallel>, #tpu.dimension_semantics<parallel>], iteration_bounds = array<i64: 2, 1>, scalar_prefetch = 0 : i64, scratch_operands = 0 : i64, tpu.core_type = #tpu.core_type<tc>, window_params = [{transform_indices = @transform_0, window_bounds = array<i64: 1, 4, 256>}, {pipeline_mode = #tpu.pipeline_mode<synchronous>, transform_indices = @transform_1, window_bounds = array<i64: 16, 4>}, {pipeline_mode = #tpu.pipeline_mode<synchronous>, transform_indices = @transform_2, window_bounds = array<i64: 4, 16>}, {pipeline_mode = #tpu.pipeline_mode<synchronous>, transform_indices = @transform_3, window_bounds = array<i64: 16, 1>}, {transform_indices = @transform_4, window_bounds = array<i64: 1, 4, 256>}, {transform_indices = @transform_5, window_bounds = array<i64: 1, 1, 256>}, {transform_indices = @transform_6, window_bounds = array<i64: 1, 1, 1, 16>}]} {
    %c0 = arith.constant 0 : index
    %c0_0 = arith.constant 0 : index
    %c0_1 = arith.constant 0 : index
    %0 = vector.load %arg2[%c0, %c0_0, %c0_1] : memref<1x4x256xf32, #tpu.memory_space<vmem>>, vector<1x4x256xf32>
    %1 = vector.shape_cast %0 : vector<1x4x256xf32> to vector<4x256xf32>
    %c0_2 = arith.constant 0 : index
    %c0_3 = arith.constant 0 : index
    %2 = vector.load %arg3[%c0_2, %c0_3] : memref<16x4xf32, #tpu.memory_space<vmem>>, vector<16x4xf32>
    %c0_4 = arith.constant 0 : index
    %c0_5 = arith.constant 0 : index
    %3 = vector.load %arg4[%c0_4, %c0_5] : memref<4x16xf32, #tpu.memory_space<vmem>>, vector<4x16xf32>
    %c0_6 = arith.constant 0 : index
    %c0_7 = arith.constant 0 : index
    %4 = vector.load %arg5[%c0_6, %c0_7] : memref<16x1xf32, #tpu.memory_space<vmem>>, vector<16x1xf32>
    %cst = arith.constant dense<0.000000e+00> : vector<16x256xf32>
    %5 = tpu.matmul %2, %1, %cst {dimension_numbers = #tpu.dot_dimension_numbers<[1], [0], [0], [1], [0, 0, 1, 1], [], []>} : vector<16x4xf32>, vector<4x256xf32>, vector<16x256xf32> -> vector<16x256xf32>
    %cst_8 = arith.constant 2.000000e+00 : f32
    %6 = vector.broadcast %cst_8 : f32 to vector<16x256xf32>
    %7 = arith.mulf %6, %5 : vector<16x256xf32>
    %8 = vector.broadcast %4 : vector<16x1xf32> to vector<16x256xf32>
    %9 = arith.subf %8, %7 : vector<16x256xf32>
    %10 = tpu.iota {dimensions = array<i32: 0>} : vector<16x256xi32>
    %cst_9 = arith.constant dense<0x7F800000> : vector<256xf32>
    %11 = vector.multi_reduction <minimumf>, %9, %cst_9 [0] : vector<16x256xf32> to vector<256xf32>
    %12 = vector.shape_cast %11 : vector<256xf32> to vector<1x256xf32>
    %13 = vector.broadcast %12 : vector<1x256xf32> to vector<16x256xf32>
    %14 = arith.cmpf oeq, %9, %13 : vector<16x256xf32>
    %c16_i32 = arith.constant 16 : i32
    %15 = vector.broadcast %c16_i32 : i32 to vector<16x256xi32>
    %16 = arith.select %14, %10, %15 : vector<16x256xi1>, vector<16x256xi32>
    %cst_10 = arith.constant dense<2147483647> : vector<256xi32>
    %17 = vector.multi_reduction <minsi>, %16, %cst_10 [0] : vector<16x256xi32> to vector<256xi32>
    %18 = vector.shape_cast %17 : vector<256xi32> to vector<1x256xi32>
    %19 = vector.shape_cast %18 : vector<1x256xi32> to vector<1x1x256xi32>
    %c0_11 = arith.constant 0 : index
    %c0_12 = arith.constant 0 : index
    %c0_13 = arith.constant 0 : index
    %20 = vector.load %arg7[%c0_11, %c0_12, %c0_13] : memref<1x1x256xi32, #tpu.memory_space<vmem>>, vector<1x1x256xi32>
    tpu.vector_store %arg7[%c0_11, %c0_12, %c0_13], %19 {strides = array<i32>} : memref<1x1x256xi32, #tpu.memory_space<vmem>>, vector<1x1x256xi32>,
    %21 = vector.broadcast %18 : vector<1x256xi32> to vector<16x256xi32>
    %22 = arith.cmpi eq, %10, %21 : vector<16x256xi32>
    %23 = arith.extui %22 : vector<16x256xi1> to vector<16x256xi32>
    %24 = arith.sitofp %23 : vector<16x256xi32> to vector<16x256xf32>
    %cst_14 = arith.constant dense<0.000000e+00> : vector<4x256xf32>
    %25 = tpu.matmul %3, %24, %cst_14 {dimension_numbers = #tpu.dot_dimension_numbers<[1], [0], [0], [1], [0, 0, 1, 1], [], []>} : vector<4x16xf32>, vector<16x256xf32>, vector<4x256xf32> -> vector<4x256xf32>
    %26 = vector.shape_cast %25 : vector<4x256xf32> to vector<1x4x256xf32>
    %c0_15 = arith.constant 0 : index
    %c0_16 = arith.constant 0 : index
    %c0_17 = arith.constant 0 : index
    %27 = vector.load %arg6[%c0_15, %c0_16, %c0_17] : memref<1x4x256xf32, #tpu.memory_space<vmem>>, vector<1x4x256xf32>
    tpu.vector_store %arg6[%c0_15, %c0_16, %c0_17], %26 {strides = array<i32>} : memref<1x4x256xf32, #tpu.memory_space<vmem>>, vector<1x4x256xf32>,
    %28 = tpu.iota {dimensions = array<i32: 1>} : vector<1x256xi32>
    %c256_i32 = arith.constant 256 : i32
    %29 = arith.muli %arg1, %c256_i32 : i32
    %30 = vector.broadcast %29 : i32 to vector<1x256xi32>
    %31 = arith.addi %30, %28 : vector<1x256xi32>
    %c256_i32_18 = arith.constant 256 : i32
    %32 = vector.broadcast %c256_i32_18 : i32 to vector<1x256xi32>
    %33 = arith.cmpi slt, %31, %32 : vector<1x256xi32>
    %34 = arith.extui %33 : vector<1x256xi1> to vector<1x256xi32>
    %35 = arith.sitofp %34 : vector<1x256xi32> to vector<1x256xf32>
    %cst_19 = arith.constant dense<0.000000e+00> : vector<1x16xf32>
    %36 = tpu.matmul %35, %24, %cst_19 {dimension_numbers = #tpu.dot_dimension_numbers<[1], [1], [0], [0], [0, 0, 1, 0], [], []>} : vector<1x256xf32>, vector<16x256xf32>, vector<1x16xf32> -> vector<1x16xf32>
    %37 = vector.shape_cast %36 : vector<1x16xf32> to vector<1x1x1x16xf32>
    %c0_20 = arith.constant 0 : index
    %c0_21 = arith.constant 0 : index
    %c0_22 = arith.constant 0 : index
    %c0_23 = arith.constant 0 : index
    %38 = vector.load %arg8[%c0_20, %c0_21, %c0_22, %c0_23] : memref<1x1x1x16xf32, #tpu.memory_space<vmem>>, vector<1x1x1x16xf32>
    tpu.vector_store %arg8[%c0_20, %c0_21, %c0_22, %c0_23], %37 {strides = array<i32>} : memref<1x1x1x16xf32, #tpu.memory_space<vmem>>, vector<1x1x1x16xf32>,
    return
  }
  func.func @transform_0(%arg0: i32, %arg1: i32) -> (i32, i32, i32) {
    %c0_i32 = arith.constant 0 : i32
    %c0_i32_0 = arith.constant 0 : i32
    return %arg0, %c0_i32, %arg1 : i32, i32, i32
  }
  func.func @transform_1(%arg0: i32, %arg1: i32) -> (i32, i32) {
    %c0_i32 = arith.constant 0 : i32
    %c0_i32_0 = arith.constant 0 : i32
    %c0_i32_1 = arith.constant 0 : i32
    return %c0_i32, %c0_i32_0 : i32, i32
  }
  func.func @transform_2(%arg0: i32, %arg1: i32) -> (i32, i32) {
    %c0_i32 = arith.constant 0 : i32
    %c0_i32_0 = arith.constant 0 : i32
    %c0_i32_1 = arith.constant 0 : i32
    return %c0_i32, %c0_i32_0 : i32, i32
  }
  func.func @transform_3(%arg0: i32, %arg1: i32) -> (i32, i32) {
    %c0_i32 = arith.constant 0 : i32
    %c0_i32_0 = arith.constant 0 : i32
    %c0_i32_1 = arith.constant 0 : i32
    return %c0_i32, %c0_i32_0 : i32, i32
  }
  func.func @transform_4(%arg0: i32, %arg1: i32) -> (i32, i32, i32) {
    %c0_i32 = arith.constant 0 : i32
    %c0_i32_0 = arith.constant 0 : i32
    return %arg0, %c0_i32, %arg1 : i32, i32, i32
  }
  func.func @transform_5(%arg0: i32, %arg1: i32) -> (i32, i32, i32) {
    %c0_i32 = arith.constant 0 : i32
    %c0_i32_0 = arith.constant 0 : i32
    return %arg0, %c0_i32, %arg1 : i32, i32, i32
  }
  func.func @transform_6(%arg0: i32, %arg1: i32) -> (i32, i32, i32, i32) {
    %c0_i32 = arith.constant 0 : i32
    %c0_i32_0 = arith.constant 0 : i32
    %c0_i32_1 = arith.constant 0 : i32
    return %arg0, %arg1, %c0_i32, %c0_i32_0 : i32, i32, i32, i32
  }
}

</mosaic_0001>

<llo_original>
// kernel: tpu_custom_call.1
$region0: #{tpu_custom_call.1}
  #allocation0 [shape = 'u32[]', space=smem, size = 0x4, offset = 0x4, fixed_abs, tag = 'smem constant byte address 0x4 - core index']
  #allocation1 [shape = 'u32[144,128]{1,0:T(1,128)}', space=vmem, size = 0x12000, scoped, tag = 'internal scratch']
  %s0 = inlined_call_operand.vmem [shape: f32[2,4,256], index: 0, kind: input, shape index: {}]
  %s1 = inlined_call_operand.vmem [shape: f32[16,4], index: 1, kind: input, shape index: {}]
  %s2 = inlined_call_operand.vmem [shape: f32[4,16], index: 2, kind: input, shape index: {}]
  %s3 = inlined_call_operand.vmem [shape: f32[16,1], index: 3, kind: input, shape index: {}]
  %s4 = inlined_call_operand.hbm [shape: f32[2,4,256], index: 4, kind: output, shape index: {0}]
  %s5 = inlined_call_operand.hbm [shape: s32[2,1,256], index: 5, kind: output, shape index: {1}]
  %s6 = inlined_call_operand.hbm [shape: f32[2,1,1,16], index: 6, kind: output, shape index: {2}]
  %7 = xla_tuple %s4, %s5, %s6
  %s8 = sld [smem:[#allocation0]]
  $region65: #{tpu_custom_call.1} parent=0
    _
  %s10 = ssub.s32 1, %s8
  %s11 = scalar_select 0, %s10, %s8
  $region1: #{tpu_custom_call.1} parent=0
    #allocation2 [shape = 'u8[8192]{0}', space=vmem, size = 0x2000, scoped, tag = 'output window, operand 0']
    #allocation3 [shape = 's32[2]{0}', space=sflag, size = 0x8, scoped, tag = 'scoped memory for tpu_custom_call.1']
    #allocation4 [shape = 'u8[2048]{0}', space=vmem, size = 0x800, scoped, tag = 'output window, operand 1']
    #allocation5 [shape = 's32[2]{0}', space=sflag, size = 0x8, scoped, tag = 'scoped memory for tpu_custom_call.1']
    #allocation6 [shape = 'u8[1024]{0}', space=vmem, size = 0x400, scoped, tag = 'output window, operand 2']
    %12 = vsyncpa [#allocation3], 0
    %s13 = scalar_lea.sflag [#allocation3], 1
    %14 = vsyncpa %s13, 0
    %15 = vsyncpa [#allocation5], 0
    %s16 = scalar_lea.sflag [#allocation5], 1
    %17 = vsyncpa %s16, 0
    loop: start=0, step=1, limit=4
    $region2: #{tpu_custom_call.1} parent=1 // loop_pre_header
      _
    $region3: #{tpu_custom_call.1} parent=1 // loop_header
      %s19 = sphi 0, %s23
      %p20 = scmp.ge.s32.totalorder %s19, 4
      %s26 = sphi 0, %s38
      %s27 = sphi 0, %s34
      %s28 = sphi 0, %s26
      %s29 = sphi 0, %s27
      %s30 = sphi 0, %s28
      %s31 = sphi 0, %s29
      %s43 = sphi 0, %s45
      %s46 = sphi 0, %s43
      %s47 = sphi 0, %s46
      %s63 = sphi 0, %s47
      %s67 = sphi 0, %s67
      %s69 = sphi 0, %s67
      %s70 = sphi 0, %s69
      %s84 = sphi 0, %s70
      %s88 = sphi 0, %s88
      %s90 = sphi 0, %s88
      %s91 = sphi 0, %s90
      %s105 = sphi 0, %s91
      %s109 = sphi 0, %s109
      %s111 = sphi 0, %s109
      %s112 = sphi 0, %s111
      %s126 = sphi 0, %s112
      %s134 = sphi 0, %s136
      %s137 = sphi 0, %s134
      %s138 = sphi 0, %s137
      %s154 = sphi 0, %s138
      %s162 = sphi 0, %s164
      %s165 = sphi 0, %s162
      %s166 = sphi 0, %s165
      %s182 = sphi 0, %s166
      %s190 = sphi 0, %s192
      %s193 = sphi 0, %s190
      %s194 = sphi 0, %s193
      %s210 = sphi 0, %s194
    $region4: #{tpu_custom_call.1} parent=1 // loop_header_branch
      %22 = sbr.rel (%p20) target = $region8
    $region5: #{tpu_custom_call.1} parent=1 // loop_body
      %s24 = ssub.s32 %s19, 1
      %s25 = ssub.s32 %s19, 2
      %s32 = sadd.s32 1, %s27
      %p33 = scmp.ge.s32.totalorder %s32, 1
      %s34 = scalar_select %p33, 0, %s32
      %s35 = sadd.s32 1, %s26
      %s36 = scalar_select %p33, %s35, %s26
      %p37 = scmp.ge.s32.totalorder %s36, 2
      %s38 = scalar_select %p37, 0, %s36
      %s39 = ssub.s32 %s26, %s38
      %s40 = ssub.s32 %s27, %s34
      %s41 = sor.u32 %s39, %s40
      %p42 = scmp.eq.s32.totalorder %s41, 0
      %s44 = sadd.s32 %s43, 1
      %s45 = scalar_select %p42, %s43, %s44
      %p48 = pneg %p42
      %p49 = scmp.eq.s32.totalorder %s19, 1
      %p50 = por %p48, %p49
      %p51 = scmp.ne.s32.totalorder %s43, %s46
      %p52 = scmp.eq.s32.totalorder %s19, 0
      %p53 = por %p51, %p52
      %p54 = scmp.ne.s32.totalorder %s43, %s46
      %p55 = scmp.eq.s32.totalorder %s24, 1
      %p56 = por %p54, %p55
      %p57 = scmp.ne.s32.totalorder %s46, %s47
      %p58 = scmp.eq.s32.totalorder %s24, 0
      %p59 = por %p57, %p58
      %p60 = scmp.ne.s32.totalorder %s46, %s47
      %p61 = scmp.eq.s32.totalorder %s25, 1
      %p62 = por %p60, %p61
      %p64 = scmp.ne.s32.totalorder %s47, %s63
      %p65 = scmp.eq.s32.totalorder %s25, 0
      %p66 = por %p64, %p65
      %s68 = sadd.s32 %s67, 1
      %p71 = scmp.eq.s32.totalorder %s19, 1
      %p72 = scmp.ne.s32.totalorder %s67, %s69
      %p73 = scmp.eq.s32.totalorder %s19, 0
      %p74 = por %p72, %p73
      %p75 = scmp.ne.s32.totalorder %s67, %s69
      %p76 = scmp.eq.s32.totalorder %s24, 1
      %p77 = por %p75, %p76
      %p78 = scmp.ne.s32.totalorder %s69, %s70
      %p79 = scmp.eq.s32.totalorder %s24, 0
      %p80 = por %p78, %p79
      %p81 = scmp.ne.s32.totalorder %s69, %s70
      %p82 = scmp.eq.s32.totalorder %s25, 1
      %p83 = por %p81, %p82
      %p85 = scmp.ne.s32.totalorder %s70, %s84
      %p86 = scmp.eq.s32.totalorder %s25, 0
      %p87 = por %p85, %p86
      %s89 = sadd.s32 %s88, 1
      %p92 = scmp.eq.s32.totalorder %s19, 1
      %p93 = scmp.ne.s32.totalorder %s88, %s90
      %p94 = scmp.eq.s32.totalorder %s19, 0
      %p95 = por %p93, %p94
      %p96 = scmp.ne.s32.totalorder %s88, %s90
      %p97 = scmp.eq.s32.totalorder %s24, 1
      %p98 = por %p96, %p97
      %p99 = scmp.ne.s32.totalorder %s90, %s91
      %p100 = scmp.eq.s32.totalorder %s24, 0
      %p101 = por %p99, %p100
      %p102 = scmp.ne.s32.totalorder %s90, %s91
      %p103 = scmp.eq.s32.totalorder %s25, 1
      %p104 = por %p102, %p103
      %p106 = scmp.ne.s32.totalorder %s91, %s105
      %p107 = scmp.eq.s32.totalorder %s25, 0
      %p108 = por %p106, %p107
      %s110 = sadd.s32 %s109, 1
      %p113 = scmp.eq.s32.totalorder %s19, 1
      %p114 = scmp.ne.s32.totalorder %s109, %s111
      %p115 = scmp.eq.s32.totalorder %s19, 0
      %p116 = por %p114, %p115
      %p117 = scmp.ne.s32.totalorder %s109, %s111
      %p118 = scmp.eq.s32.totalorder %s24, 1
      %p119 = por %p117, %p118
      %p120 = scmp.ne.s32.totalorder %s111, %s112
      %p121 = scmp.eq.s32.totalorder %s24, 0
      %p122 = por %p120, %p121
      %p123 = scmp.ne.s32.totalorder %s111, %s112
      %p124 = scmp.eq.s32.totalorder %s25, 1
      %p125 = por %p123, %p124
      %p127 = scmp.ne.s32.totalorder %s112, %s126
      %p128 = scmp.eq.s32.totalorder %s25, 0
      %p129 = por %p127, %p128
      %s130 = ssub.s32 %s26, %s38
      %s131 = ssub.s32 %s27, %s34
      %s132 = sor.u32 %s130, %s131
      %p133 = scmp.eq.s32.totalorder %s132, 0
      %s135 = sadd.s32 %s134, 1
      %s136 = scalar_select %p133, %s134, %s135
      %p139 = pneg %p133
      %p140 = scmp.eq.s32.totalorder %s19, 1
      %p141 = por %p139, %p140
      %p142 = scmp.ne.s32.totalorder %s134, %s137
      %p143 = scmp.eq.s32.totalorder %s19, 0
      %p144 = por %p142, %p143
      %p145 = scmp.ne.s32.totalorder %s134, %s137
      %p146 = scmp.eq.s32.totalorder %s24, 1
      %p147 = por %p145, %p146
      %p148 = scmp.ne.s32.totalorder %s137, %s138
      %p149 = scmp.eq.s32.totalorder %s24, 0
      %p150 = por %p148, %p149
      %p151 = scmp.ne.s32.totalorder %s137, %s138
      %p152 = scmp.eq.s32.totalorder %s25, 1
      %p153 = por %p151, %p152
      %p155 = scmp.ne.s32.totalorder %s138, %s154
      %p156 = scmp.eq.s32.totalorder %s25, 0
      %p157 = por %p155, %p156
      %s158 = ssub.s32 %s26, %s38
      %s159 = ssub.s32 %s27, %s34
      %s160 = sor.u32 %s158, %s159
      %p161 = scmp.eq.s32.totalorder %s160, 0
      %s163 = sadd.s32 %s162, 1
      %s164 = scalar_select %p161, %s162, %s163
      %p167 = pneg %p161
      %p168 = scmp.eq.s32.totalorder %s19, 1
      %p169 = por %p167, %p168
      %p170 = scmp.ne.s32.totalorder %s162, %s165
      %p171 = scmp.eq.s32.totalorder %s19, 0
      %p172 = por %p170, %p171
      %p173 = scmp.ne.s32.totalorder %s162, %s165
      %p174 = scmp.eq.s32.totalorder %s24, 1
      %p175 = por %p173, %p174
      %p176 = scmp.ne.s32.totalorder %s165, %s166
      %p177 = scmp.eq.s32.totalorder %s24, 0
      %p178 = por %p176, %p177
      %p179 = scmp.ne.s32.totalorder %s165, %s166
      %p180 = scmp.eq.s32.totalorder %s25, 1
      %p181 = por %p179, %p180
      %p183 = scmp.ne.s32.totalorder %s166, %s182
      %p184 = scmp.eq.s32.totalorder %s25, 0
      %p185 = por %p183, %p184
      %s186 = ssub.s32 %s26, %s38
      %s187 = ssub.s32 %s27, %s34
      %s188 = sor.u32 %s186, %s187
      %p189 = scmp.eq.s32.totalorder %s188, 0
      %s191 = sadd.s32 %s190, 1
      %s192 = scalar_select %p189, %s190, %s191
      %p195 = pneg %p189
      %p196 = scmp.eq.s32.totalorder %s19, 1
      %p197 = por %p195, %p196
      %p198 = scmp.ne.s32.totalorder %s190, %s193
      %p199 = scmp.eq.s32.totalorder %s19, 0
      %p200 = por %p198, %p199
      %p201 = scmp.ne.s32.totalorder %s190, %s193
      %p202 = scmp.eq.s32.totalorder %s24, 1
      %p203 = por %p201, %p202
      %p204 = scmp.ne.s32.totalorder %s193, %s194
      %p205 = scmp.eq.s32.totalorder %s24, 0
      %p206 = por %p204, %p205
      %p207 = scmp.ne.s32.totalorder %s193, %s194
      %p208 = scmp.eq.s32.totalorder %s25, 1
      %p209 = por %p207, %p208
      %p211 = scmp.ne.s32.totalorder %s194, %s210
      %p212 = scmp.eq.s32.totalorder %s25, 0
      %p213 = por %p211, %p212
      %p214 = scmp.le.s32.totalorder 1, %s19
      %p215 = scmp.lt.s32.totalorder %s19, 3
      %p216 = pnand %p214, %p215
      %p217 = pneg %p216
      // Predicated region
      $region9: #{tpu_custom_call.1} parent=5 // pred_check
        _
      $region10: #{tpu_custom_call.1} parent=5 // pred_check_branch
        %219 = sbr.rel (%p216) target = $region12
      $region11: #{tpu_custom_call.1} parent=5 // pred_region
        %s220 = ssub.s32 %s19, 1
        // Predicated region
        $region13: #{tpu_custom_call.1} parent=11 // pred_check
          %p221 = pneg %p80
        $region14: #{tpu_custom_call.1} parent=11 // pred_check_branch
          %223 = sbr.rel (%p221) target = $region16
        $region15: #{tpu_custom_call.1} parent=11 // pred_region
          _
        $region16: #{tpu_custom_call.1} parent=11 // pred_fallthru
          _
        // Predicated region
        $region17: #{tpu_custom_call.1} parent=11 // pred_check
          %p224 = pneg %p101
        $region18: #{tpu_custom_call.1} parent=11 // pred_check_branch
          %226 = sbr.rel (%p224) target = $region20
        $region19: #{tpu_custom_call.1} parent=11 // pred_region
          _
        $region20: #{tpu_custom_call.1} parent=11 // pred_fallthru
          _
        // Predicated region
        $region21: #{tpu_custom_call.1} parent=11 // pred_check
          %p227 = pneg %p122
        $region22: #{tpu_custom_call.1} parent=11 // pred_check_branch
          %229 = sbr.rel (%p227) target = $region24
        $region23: #{tpu_custom_call.1} parent=11 // pred_region
          _
        $region24: #{tpu_custom_call.1} parent=11 // pred_fallthru
          _
      $region12: #{tpu_custom_call.1} parent=5 // pred_fallthru
        _
      %p230 = scmp.lt.s32.totalorder %s19, 2
      // Predicated region
      $region25: #{tpu_custom_call.1} parent=5 // pred_check
        %p231 = pneg %p230
      $region26: #{tpu_custom_call.1} parent=5 // pred_check_branch
        %233 = sbr.rel (%p231) target = $region28
      $region27: #{tpu_custom_call.1} parent=5 // pred_region
        // Predicated region
        $region29: #{tpu_custom_call.1} parent=27 // pred_check
          %p234 = pneg %p53
        $region30: #{tpu_custom_call.1} parent=27 // pred_check_branch
          %236 = sbr.rel (%p234) target = $region32
        $region31: #{tpu_custom_call.1} parent=27 // pred_region
          %s237 = smul.u32 2, %s27
          %p238 = scmp.lt.s32.totalorder %s26, 1
          %s239 = scalar_select %p238, %s26, 1
          %p240 = scmp.lt.s32.totalorder %s237, 1
          %s241 = scalar_select %p240, %s237, 1
          %s242 = smul.addr %s239, 2
          %s243 = sadd.s32 %s241, %s242
          %s244 = smul.addr %s243, 4
          %s245 = scalar_lea.vmem %s0, %s244
          %s246 = smul.u32 2, %s27
        $region32: #{tpu_custom_call.1} parent=27 // pred_fallthru
          _
      $region28: #{tpu_custom_call.1} parent=5 // pred_fallthru
        _
      %p247 = scmp.le.s32.totalorder 1, %s19
      %p248 = scmp.lt.s32.totalorder %s19, 3
      %p249 = pnand %p247, %p248
      %p250 = pneg %p249
      // Predicated region
      $region33: #{tpu_custom_call.1} parent=5 // pred_check
        _
      $region34: #{tpu_custom_call.1} parent=5 // pred_check_branch
        %252 = sbr.rel (%p249) target = $region36
      $region35: #{tpu_custom_call.1} parent=5 // pred_region
        %s253 = ssub.s32 %s19, 1
        %s254 = smul.u32 2, %s29
        %p255 = scmp.lt.s32.totalorder %s28, 1
        %s256 = scalar_select %p255, %s28, 1
        %p257 = scmp.lt.s32.totalorder %s254, 1
        %s258 = scalar_select %p257, %s254, 1
        %s259 = smul.addr %s256, 2
        %s260 = sadd.s32 %s258, %s259
        %s261 = smul.addr %s260, 4
        %s262 = scalar_lea.vmem %s0, %s261
        %p263 = pneg %p59
        %p264 = pneg %p56
        %p265 = pneg %p80
        %p266 = pneg %p77
        %p267 = pneg %p101
        %p268 = pneg %p98
        %p269 = pneg %p122
        %p270 = pneg %p119
        %p271 = pneg %p150
        %p272 = pneg %p147
        %s273 = sand.u32 %s137, 1
        %s274 = scalar_lea.sflag [#allocation3], %s273
        %s275 = sand.u32 %s137, 1
        %s276 = smul.addr %s275, 8
        %s277 = scalar_lea.vmem [#allocation2], %s276
        %p278 = pneg %p178
        %p279 = pneg %p175
        %s280 = sand.u32 %s24, 1
        %s281 = scalar_lea.sflag [#allocation5], %s280
        %s282 = sand.u32 %s165, 1
        %s283 = smul.addr %s282, 2
        %s284 = scalar_lea.vmem [#allocation4], %s283
        %p285 = pneg %p206
        %p286 = pneg %p203
        %s287 = sand.u32 %s24, 1
        %s288 = scalar_lea.sflag [#allocation5], %s287
        %s289 = sand.u32 %s193, 1
        %s290 = scalar_lea.vmem [#allocation6], %s289
        %s291 = smul.u32 2, %s29
        %p292 = scmp.lt.s32.totalorder %s28, 1
        %s293 = scalar_select %p292, %s28, 1
        %p294 = scmp.lt.s32.totalorder %s291, 1
        %s295 = scalar_select %p294, %s291, 1
        %s296 = smul.addr %s293, 2
        %s297 = sadd.s32 %s295, %s296
        %s298 = smul.addr %s297, 4
        %s299 = scalar_lea.vmem %s0, %s298
        %s300 = smul.u32 2, %s29
        %s301 = smul.u32 2, %s29
        %s302 = smul.u32 2, %s29
        %v303 = vld [vmem:[%s299] sm:$0xff]
        %v304 = vld [vmem:[%s1] sm:$0xff]
        %v305 = vld [vmem:[%s1 + $0x8] sm:$0xff]
        %v306 = vld [vmem:[%s2] sm:$0xf]
        %v307 = vld [vmem:[%s3] sm:$0xff]
        %v308 = vld [vmem:[%s3 + $0x8] sm:$0xff]
        %v310 = vcombine.high %v303, %v303
        %vm311 = vcmask 31744
        %v313 = vsel %vm311, %v304, 0
        %v316 = vsel %vm311, %v305, 0
        %vm318 = vcmask 1043456
        %v319 = vsel %vm318, %v303, 0
        %v321 = vsel %vm318, %v310, 0
        %323 = vmatprep.subr.mxu0 %v321
        %324 = vmatpush1.msra.mxu0 %v319
        %325 = vmatprep.subr.mxu0 0.0
        %326 = vmatpush1.msra.mxu0 0.0
        %327 = vmatprep.subr.mxu0 0.0
        %328 = vmatpush1.msra.mxu0 0.0
        %329 = vmatprep.subr.mxu0 0.0
        %330 = vmatpush1.msra.mxu0 0.0
        %331 = vmatprep.subr.mxu0 0.0
        %332 = vmatpush1.msra.mxu0 0.0
        %333 = vmatprep.subr.mxu0 0.0
        %334 = vmatpush1.msra.mxu0 0.0
        %335 = vmatprep.subr.mxu0 0.0
        %336 = vmatpush1.msra.mxu0 0.0
        %337 = vmatprep.subr.mxu0 0.0
        %338 = vmatpush1.msra.mxu0 0.0
        %339 = vmatprep.subr.mxu0 0.0
        %340 = vmatpush1.msra.mxu0 0.0
        %341 = vmatprep.subr.mxu0 0.0
        %342 = vmatpush1.msra.mxu0 0.0
        %343 = vmatprep.subr.mxu0 0.0
        %344 = vmatpush1.msra.mxu0 0.0
        %345 = vmatprep.subr.mxu0 0.0
        %346 = vmatpush1.msra.mxu0 0.0
        %347 = vmatprep.subr.mxu0 0.0
        %348 = vmatpush1.msra.mxu0 0.0
        %349 = vmatprep.subr.mxu0 0.0
        %350 = vmatpush1.msra.mxu0 0.0
        %351 = vmatprep.subr.mxu0 0.0
        %352 = vmatpush1.msra.mxu0 0.0
        %353 = vmatprep.subr.mxu0 0.0
        %354 = vmatpush1.msra.mxu0 0.0
        %355 = vmatprep.subr.mxu0 0.0
        %356 = vmatpush1.msra.mxu0 0.0
        %357 = vmatprep.subr.mxu0 0.0
        %358 = vmatpush1.msra.mxu0 0.0
        %359 = vmatprep.subr.mxu0 0.0
        %360 = vmatpush1.msra.mxu0 0.0
        %361 = vmatprep.subr.mxu0 0.0
        %362 = vmatpush1.msra.mxu0 0.0
        %363 = vmatprep.subr.mxu0 0.0
        %364 = vmatpush1.msra.mxu0 0.0
        %365 = vmatprep.subr.mxu0 0.0
        %366 = vmatpush1.msra.mxu0 0.0
        %367 = vmatprep.subr.mxu0 0.0
        %368 = vmatpush1.msra.mxu0 0.0
        %369 = vmatprep.subr.mxu0 0.0
        %370 = vmatpush1.msra.mxu0 0.0
        %371 = vmatprep.subr.mxu0 0.0
        %372 = vmatpush1.msra.mxu0 0.0
        %373 = vmatprep.subr.mxu0 0.0
        %374 = vmatpush1.msra.mxu0 0.0
        %375 = vmatprep.subr.mxu0 0.0
        %376 = vmatpush1.msra.mxu0 0.0
        %377 = vmatprep.subr.mxu0 0.0
        %378 = vmatpush1.msra.mxu0 0.0
        %379 = vmatprep.subr.mxu0 0.0
        %380 = vmatpush1.msra.mxu0 0.0
        %381 = vmatprep.subr.mxu0 0.0
        %382 = vmatpush1.msra.mxu0 0.0
        %383 = vmatprep.subr.mxu0 0.0
        %384 = vmatpush1.msra.mxu0 0.0
        %385 = vmatprep.subr.mxu0 0.0
        %386 = vmatpush1.msra.mxu0 0.0
        %387 = vmatprep.mubr.f32.mxu0 0.0
        %388 = vmatmul.mubr.f32.gmra.mrb[0].mxu0 %v313
        %v389 = vpop.f32.mrb[0].mxu0
        %v390 = vadd.f32 0.0, %v389
        %v391 = vpop.f32.mrb[0].mxu0
        %v392 = vadd.f32 0.0, %v391
        %393 = vmatprep.mubr.f32.mxu0 0.0
        %394 = vmatmul.mubr.f32.gmra.mrb[0].mxu0 %v316
        %v395 = vpop.f32.mrb[0].mxu0
        %v396 = vadd.f32 0.0, %v395
        %v397 = vpop.f32.mrb[0].mxu0
        %v398 = vadd.f32 0.0, %v397
        %399 = vdwg.mxu0
        %v400 = vmul.f32 %v390, 2.0
        %v401 = vmul.f32 %v392, 2.0
        %v402 = vmul.f32 %v396, 2.0
        %v403 = vmul.f32 %v398, 2.0
        %405 = vset.pattern.permute.xlu0 0
        %406 = vperm.xlu0 %405, %v307
        %v407 = vpop.permute.xlu0 %406
        %410 = vset.pattern.permute.xlu0 0
        %411 = vperm.xlu0 %410, %v308
        %v412 = vpop.permute.xlu0 %411
        %v414 = vsub.f32 %v407, %v400
        %v415 = vsub.f32 %v407, %v401
        %v416 = vsub.f32 %v412, %v402
        %v417 = vsub.f32 %v412, %v403
        %v418 = vlaneseq
        %v419 = vshrl.u32 %v418, 7
        %v420 = vadd.s32 %v419, 8
        %v421 = vmin.f32 %v414, %v416
        %v422 = vrot.slane %v421, 4
        %v423 = vmin.f32 %v421, %v422
        %v424 = vrot.slane %v423, 2
        %v425 = vmin.f32 %v423, %v424
        %v426 = vrot.slane %v425, 1
        %v427 = vmin.f32 %v425, %v426
        %v428 = vmin.f32 %v415, %v417
        %v429 = vrot.slane %v428, 4
        %v430 = vmin.f32 %v428, %v429
        %v431 = vrot.slane %v430, 2
        %v432 = vmin.f32 %v430, %v431
        %v433 = vrot.slane %v432, 1
        %v434 = vmin.f32 %v432, %v433
        %vm435 = vcmp.eq.f32.partialorder %v414, %v427
        %vm436 = vcmp.eq.f32.partialorder %v415, %v434
        %vm437 = vcmp.eq.f32.partialorder %v416, %v427
        %vm438 = vcmp.eq.f32.partialorder %v417, %v434
        %v439 = vsel %vm435, %v419, 16
        %v440 = vsel %vm436, %v419, 16
        %v441 = vsel %vm437, %v420, 16
        %v442 = vsel %vm438, %v420, 16
        %vm443 = vcmp.lt.s32.totalorder %v439, %v441
        %v444 = vsel %vm443, %v439, %v441
        %v445 = vrot.slane %v444, 4
        %vm446 = vcmp.lt.s32.totalorder %v444, %v445
        %v447 = vsel %vm446, %v444, %v445
        %v448 = vrot.slane %v447, 2
        %vm449 = vcmp.lt.s32.totalorder %v447, %v448
        %v450 = vsel %vm449, %v447, %v448
        %v451 = vrot.slane %v450, 1
        %vm452 = vcmp.lt.s32.totalorder %v450, %v451
        %v453 = vsel %vm452, %v450, %v451
        %vm454 = vcmp.lt.s32.totalorder %v440, %v442
        %v455 = vsel %vm454, %v440, %v442
        %v456 = vrot.slane %v455, 4
        %vm457 = vcmp.lt.s32.totalorder %v455, %v456
        %v458 = vsel %vm457, %v455, %v456
        %v459 = vrot.slane %v458, 2
        %vm460 = vcmp.lt.s32.totalorder %v458, %v459
        %v461 = vsel %vm460, %v458, %v459
        %v462 = vrot.slane %v461, 1
        %vm463 = vcmp.lt.s32.totalorder %v461, %v462
        %v464 = vsel %vm463, %v461, %v462
        %v465 = vcombine.low %v453, %v464
        %v467 = vunpack.c.l.s4 1966171168
        %v468 = vunpack.c.0.s8 %v467
        %v469 = vlaneseq
        %v470 = vshrl.u32 %v469, 7
        %v471 = vsub.s32 %v468, %v470
        %v472 = vrot.slane %v465, %v471
        %v474 = vunpack.c.l.s4 1966171168
        %v475 = vunpack.c.0.s8 %v474
        %v476 = vlaneseq
        %v477 = vshrl.u32 %v476, 7
        %v478 = vsub.s32 %v475, %v477
        %v479 = vrot.slane %v472, %v478
        %v480 = vlaneseq
        %vm481 = vcmp.ge.s32.totalorder %v480, 0
        %vm482 = vcmp.lt.s32.totalorder %v480, 256
        %vm483 = vmand %vm481, %vm482
        %484 = vst.msk [vmem:[%s284] sm:$0x3] %vm483, %v479
        %vm485 = vcmp.eq.s32.totalorder %v419, %v453
        %vm486 = vcmp.eq.s32.totalorder %v419, %v464
        %vm487 = vcmp.eq.s32.totalorder %v420, %v453
        %vm488 = vcmp.eq.s32.totalorder %v420, %v464
        %v489 = vsel %vm485, 1, 0
        %v490 = vsel %vm486, 1, 0
        %v491 = vsel %vm487, 1, 0
        %v492 = vsel %vm488, 1, 0
        %v493 = vcvt.s32.f32 %v489
        %v494 = vcvt.s32.f32 %v490
        %v495 = vcvt.s32.f32 %v491
        %v496 = vcvt.s32.f32 %v492
        %vm497 = vcmask 130048
        %v499 = vsel %vm497, %v306, 0
        %501 = vmatprep.subr.mxu0 %v494
        %502 = vmatpush1.msra.mxu0 %v493
        %503 = vmatprep.subr.mxu0 %v496
        %504 = vmatpush1.msra.mxu0 %v495
        %505 = vmatprep.subr.mxu0 0.0
        %506 = vmatpush1.msra.mxu0 0.0
        %507 = vmatprep.subr.mxu0 0.0
        %508 = vmatpush1.msra.mxu0 0.0
        %509 = vmatprep.subr.mxu0 0.0
        %510 = vmatpush1.msra.mxu0 0.0
        %511 = vmatprep.subr.mxu0 0.0
        %512 = vmatpush1.msra.mxu0 0.0
        %513 = vmatprep.subr.mxu0 0.0
        %514 = vmatpush1.msra.mxu0 0.0
        %515 = vmatprep.subr.mxu0 0.0
        %516 = vmatpush1.msra.mxu0 0.0
        %517 = vmatprep.subr.mxu0 0.0
        %518 = vmatpush1.msra.mxu0 0.0
        %519 = vmatprep.subr.mxu0 0.0
        %520 = vmatpush1.msra.mxu0 0.0
        %521 = vmatprep.subr.mxu0 0.0
        %522 = vmatpush1.msra.mxu0 0.0
        %523 = vmatprep.subr.mxu0 0.0
        %524 = vmatpush1.msra.mxu0 0.0
        %525 = vmatprep.subr.mxu0 0.0
        %526 = vmatpush1.msra.mxu0 0.0
        %527 = vmatprep.subr.mxu0 0.0
        %528 = vmatpush1.msra.mxu0 0.0
        %529 = vmatprep.subr.mxu0 0.0
        %530 = vmatpush1.msra.mxu0 0.0
        %531 = vmatprep.subr.mxu0 0.0
        %532 = vmatpush1.msra.mxu0 0.0
        %533 = vmatprep.subr.mxu0 0.0
        %534 = vmatpush1.msra.mxu0 0.0
        %535 = vmatprep.subr.mxu0 0.0
        %536 = vmatpush1.msra.mxu0 0.0
        %537 = vmatprep.subr.mxu0 0.0
        %538 = vmatpush1.msra.mxu0 0.0
        %539 = vmatprep.subr.mxu0 0.0
        %540 = vmatpush1.msra.mxu0 0.0
        %541 = vmatprep.subr.mxu0 0.0
        %542 = vmatpush1.msra.mxu0 0.0
        %543 = vmatprep.subr.mxu0 0.0
        %544 = vmatpush1.msra.mxu0 0.0
        %545 = vmatprep.subr.mxu0 0.0
        %546 = vmatpush1.msra.mxu0 0.0
        %547 = vmatprep.subr.mxu0 0.0
        %548 = vmatpush1.msra.mxu0 0.0
        %549 = vmatprep.subr.mxu0 0.0
        %550 = vmatpush1.msra.mxu0 0.0
        %551 = vmatprep.subr.mxu0 0.0
        %552 = vmatpush1.msra.mxu0 0.0
        %553 = vmatprep.subr.mxu0 0.0
        %554 = vmatpush1.msra.mxu0 0.0
        %555 = vmatprep.subr.mxu0 0.0
        %556 = vmatpush1.msra.mxu0 0.0
        %557 = vmatprep.subr.mxu0 0.0
        %558 = vmatpush1.msra.mxu0 0.0
        %559 = vmatprep.subr.mxu0 0.0
        %560 = vmatpush1.msra.mxu0 0.0
        %561 = vmatprep.subr.mxu0 0.0
        %562 = vmatpush1.msra.mxu0 0.0
        %563 = vmatprep.subr.mxu0 0.0
        %564 = vmatpush1.msra.mxu0 0.0
        %565 = vmatprep.mubr.f32.mxu0 0.0
        %566 = vmatmul.mubr.f32.gmra.mrb[0].mxu0 %v499
        %v567 = vpop.f32.mrb[0].mxu0
        %v568 = vadd.f32 0.0, %v567
        %v569 = vpop.f32.mrb[0].mxu0
        %v570 = vadd.f32 0.0, %v569
        %571 = vdwg.mxu0
        %v574 = vcombine.low %v568, %v570
        %576 = vst [vmem:[%s277] sm:$0xff] %v574
        %v577 = vlaneseq
        %v578 = vand.u32 %v577, 127
        %v579 = vadd.s32 %v578, 128
        %s580 = smul.u32 %s29, 256
        %v581 = vstv %s580
        %v582 = vadd.s32 %v581, %v578
        %v583 = vadd.s32 %v581, %v579
        %vm584 = vcmp.lt.s32.totalorder %v582, 256
        %vm585 = vcmp.lt.s32.totalorder %v583, 256
        %v586 = vsel %vm584, 1, 0
        %v587 = vsel %vm585, 1, 0
        %v588 = vcvt.s32.f32 %v586
        %v589 = vcvt.s32.f32 %v587
        %590 = vmatprep.subr.mxu0 %v494
        %591 = vmatpush1.xpose.msra.mxu0 %v493
        %592 = vmatprep.subr.mxu0 %v496
        %593 = vmatpush1.xpose.msra.mxu0 %v495
        %594 = vmatprep.subr.mxu0 0.0
        %595 = vmatpush1.xpose.msra.mxu0 0.0
        %596 = vmatprep.subr.mxu0 0.0
        %597 = vmatpush1.xpose.msra.mxu0 0.0
        %598 = vmatprep.subr.mxu0 0.0
        %599 = vmatpush1.xpose.msra.mxu0 0.0
        %600 = vmatprep.subr.mxu0 0.0
        %601 = vmatpush1.xpose.msra.mxu0 0.0
        %602 = vmatprep.subr.mxu0 0.0
        %603 = vmatpush1.xpose.msra.mxu0 0.0
        %604 = vmatprep.subr.mxu0 0.0
        %605 = vmatpush1.xpose.msra.mxu0 0.0
        %606 = vmatprep.subr.mxu0 0.0
        %607 = vmatpush1.xpose.msra.mxu0 0.0
        %608 = vmatprep.subr.mxu0 0.0
        %609 = vmatpush1.xpose.msra.mxu0 0.0
        %610 = vmatprep.subr.mxu0 0.0
        %611 = vmatpush1.xpose.msra.mxu0 0.0
        %612 = vmatprep.subr.mxu0 0.0
        %613 = vmatpush1.xpose.msra.mxu0 0.0
        %614 = vmatprep.subr.mxu0 0.0
        %615 = vmatpush1.xpose.msra.mxu0 0.0
        %616 = vmatprep.subr.mxu0 0.0
        %617 = vmatpush1.xpose.msra.mxu0 0.0
        %618 = vmatprep.subr.mxu0 0.0
        %619 = vmatpush1.xpose.msra.mxu0 0.0
        %620 = vmatprep.subr.mxu0 0.0
        %621 = vmatpush1.xpose.msra.mxu0 0.0
        %622 = vmatprep.subr.mxu0 0.0
        %623 = vmatpush1.xpose.msra.mxu0 0.0
        %624 = vmatprep.subr.mxu0 0.0
        %625 = vmatpush1.xpose.msra.mxu0 0.0
        %626 = vmatprep.subr.mxu0 0.0
        %627 = vmatpush1.xpose.msra.mxu0 0.0
        %628 = vmatprep.subr.mxu0 0.0
        %629 = vmatpush1.xpose.msra.mxu0 0.0
        %630 = vmatprep.subr.mxu0 0.0
        %631 = vmatpush1.xpose.msra.mxu0 0.0
        %632 = vmatprep.subr.mxu0 0.0
        %633 = vmatpush1.xpose.msra.mxu0 0.0
        %634 = vmatprep.subr.mxu0 0.0
        %635 = vmatpush1.xpose.msra.mxu0 0.0
        %636 = vmatprep.subr.mxu0 0.0
        %637 = vmatpush1.xpose.msra.mxu0 0.0
        %638 = vmatprep.subr.mxu0 0.0
        %639 = vmatpush1.xpose.msra.mxu0 0.0
        %640 = vmatprep.subr.mxu0 0.0
        %641 = vmatpush1.xpose.msra.mxu0 0.0
        %642 = vmatprep.subr.mxu0 0.0
        %643 = vmatpush1.xpose.msra.mxu0 0.0
        %644 = vmatprep.subr.mxu0 0.0
        %645 = vmatpush1.xpose.msra.mxu0 0.0
        %646 = vmatprep.subr.mxu0 0.0
        %647 = vmatpush1.xpose.msra.mxu0 0.0
        %648 = vmatprep.subr.mxu0 0.0
        %649 = vmatpush1.xpose.msra.mxu0 0.0
        %650 = vmatprep.subr.mxu0 0.0
        %651 = vmatpush1.xpose.msra.mxu0 0.0
        %652 = vmatprep.subr.mxu0 0.0
        %653 = vmatpush1.xpose.msra.mxu0 0.0
        %654 = vmatprep.mubr.f32.mxu0 %v589
        %655 = vmatmul.mubr.f32.gmra.mrb[0].mxu0 %v588
        %v656 = vpop.f32.mrb[0].mxu0
        %v657 = vadd.f32 0.0, %v656
        %v658 = vpop.f32.mrb[0].mxu0
        %659 = vdwg.mxu0
        %vm660 = vcmask 122880
        %661 = vst.msk [vmem:[%s290] sm:$0x1] %vm660, %v657
        %s662 = sand.u32 %s137, 1
        %s663 = scalar_lea.sflag [#allocation3], %s662
        %s664 = sand.u32 %s137, 1
        %s665 = smul.addr %s664, 8
        %s666 = scalar_lea.vmem [#allocation2], %s665
        %s667 = sand.u32 %s24, 1
        %s668 = scalar_lea.sflag [#allocation5], %s667
        %s669 = sand.u32 %s165, 1
        %s670 = smul.addr %s669, 2
        %s671 = scalar_lea.vmem [#allocation4], %s670
        %s672 = sand.u32 %s24, 1
        %s673 = scalar_lea.sflag [#allocation5], %s672
        %s674 = sand.u32 %s193, 1
        %s675 = scalar_lea.vmem [#allocation6], %s674
        // Predicated region
        $region37: #{tpu_custom_call.1} parent=35 // pred_check
          %p676 = pneg %p147
        $region38: #{tpu_custom_call.1} parent=35 // pred_check_branch
          %678 = sbr.rel (%p676) target = $region40
        $region39: #{tpu_custom_call.1} parent=35 // pred_region
          %s679 = smul.u32 2, %s29
          %s681 = ssub.s32 128, 128
          %682 = vsyncadd %s663, %s681
          %s683 = smul.addr %s28, 2
          %s684 = sadd.s32 %s679, %s683
          %s685 = smul.addr %s684, 64
          %s686 = scalar_lea.hbm %s4, %s685
          %s688 = sshll.u32 %s666, 4
          %s689 = int_to_ptr.vmem [resolvable:$true] %s688
          %691 = dma.vmem_to_hbm [thread:$0]  %s689, 128, %s686, %s663
        $region40: #{tpu_custom_call.1} parent=35 // pred_fallthru
          _
        // Predicated region
        $region41: #{tpu_custom_call.1} parent=35 // pred_check
          %p692 = pneg %p175
        $region42: #{tpu_custom_call.1} parent=35 // pred_check_branch
          %694 = sbr.rel (%p692) target = $region44
        $region43: #{tpu_custom_call.1} parent=35 // pred_region
          %s695 = smul.u32 2, %s29
          %s697 = ssub.s32 32, 32
          %698 = vsyncadd %s668, %s697
          %s699 = smul.addr %s28, 2
          %s700 = sadd.s32 %s695, %s699
          %s701 = smul.addr %s700, 16
          %s702 = scalar_lea.hbm %s5, %s701
          %s704 = sshll.u32 %s671, 4
          %s705 = int_to_ptr.vmem [resolvable:$true] %s704
          %707 = dma.vmem_to_hbm [thread:$0]  %s705, 32, %s702, %s668
        $region44: #{tpu_custom_call.1} parent=35 // pred_fallthru
          _
        // Predicated region
        $region45: #{tpu_custom_call.1} parent=35 // pred_check
          %p708 = pneg %p203
        $region46: #{tpu_custom_call.1} parent=35 // pred_check_branch
          %710 = sbr.rel (%p708) target = $region48
        $region47: #{tpu_custom_call.1} parent=35 // pred_region
          %s712 = ssub.s32 16, 16
          %713 = vsyncadd %s673, %s712
          %s714 = sadd.s32 %s29, %s28
          %s715 = smul.addr %s714, 16
          %s716 = scalar_lea.hbm %s6, %s715
          %s718 = sshll.u32 %s675, 4
          %s719 = int_to_ptr.vmem [resolvable:$true] %s718
          %721 = dma.vmem_to_hbm [thread:$0]  %s719, 16, %s716, %s673
        $region48: #{tpu_custom_call.1} parent=35 // pred_fallthru
          _
      $region36: #{tpu_custom_call.1} parent=5 // pred_fallthru
        _
      %p722 = scmp.le.s32.totalorder 2, %s19
      // Predicated region
      $region49: #{tpu_custom_call.1} parent=5 // pred_check
        %p723 = pneg %p722
      $region50: #{tpu_custom_call.1} parent=5 // pred_check_branch
        %725 = sbr.rel (%p723) target = $region52
      $region51: #{tpu_custom_call.1} parent=5 // pred_region
        %s726 = ssub.s32 %s19, 2
        // Predicated region
        $region53: #{tpu_custom_call.1} parent=51 // pred_check
          %p727 = pneg %p153
        $region54: #{tpu_custom_call.1} parent=51 // pred_check_branch
          %729 = sbr.rel (%p727) target = $region56
        $region55: #{tpu_custom_call.1} parent=51 // pred_region
          %s730 = sand.u32 %s138, 1
          %s731 = scalar_lea.sflag [#allocation3], %s730
          %s732 = sand.u32 %s138, 1
          %s733 = smul.addr %s732, 8
          %s734 = scalar_lea.vmem [#allocation2], %s733
          %735 = dma.done %s731, 128
        $region56: #{tpu_custom_call.1} parent=51 // pred_fallthru
          _
        // Predicated region
        $region57: #{tpu_custom_call.1} parent=51 // pred_check
          %p736 = pneg %p181
        $region58: #{tpu_custom_call.1} parent=51 // pred_check_branch
          %738 = sbr.rel (%p736) target = $region60
        $region59: #{tpu_custom_call.1} parent=51 // pred_region
          %s739 = sand.u32 %s25, 1
          %s740 = scalar_lea.sflag [#allocation5], %s739
          %s741 = sand.u32 %s166, 1
          %s742 = smul.addr %s741, 2
          %s743 = scalar_lea.vmem [#allocation4], %s742
          %744 = dma.done %s740, 32
        $region60: #{tpu_custom_call.1} parent=51 // pred_fallthru
          _
        // Predicated region
        $region61: #{tpu_custom_call.1} parent=51 // pred_check
          %p745 = pneg %p209
        $region62: #{tpu_custom_call.1} parent=51 // pred_check_branch
          %747 = sbr.rel (%p745) target = $region64
        $region63: #{tpu_custom_call.1} parent=51 // pred_region
          %s748 = sand.u32 %s25, 1
          %s749 = scalar_lea.sflag [#allocation5], %s748
          %s750 = sand.u32 %s194, 1
          %s751 = scalar_lea.vmem [#allocation6], %s750
          %752 = dma.done %s749, 16
        $region64: #{tpu_custom_call.1} parent=51 // pred_fallthru
          _
      $region52: #{tpu_custom_call.1} parent=5 // pred_fallthru
        _
    $region6: #{tpu_custom_call.1} parent=1 // loop_footer
      %s23 = sadd.s32 1, %s19
    $region7: #{tpu_custom_call.1} parent=1 // loop_footer_branch
      %18 = sbr.rel target = $region3
    $region8: #{tpu_custom_call.1} parent=1 // loop_exit
      _
    %753 = vsyncpa [#allocation3], 1
    %s754 = scalar_lea.sflag [#allocation3], 1
    %755 = vsyncpa %s754, 1
    %756 = vsyncpa [#allocation5], 1
    %s757 = scalar_lea.sflag [#allocation5], 1
    %758 = vsyncpa %s757, 1

</llo_original>
